<compile_context>
chip_gen: v5e
topology: v5e:2x2
jax: 0.10.0
libtpu: 0.0.40
codegen_flags: <defaults>
</compile_context>

<pallas_src>
import functools
import math

import jax
import jax.numpy as jnp
from jax.experimental import pallas as pl
from jax.experimental.pallas import tpu as pltpu


# ---------------------------------------------------------------------------
# helpers
# ---------------------------------------------------------------------------
def _pick_tile(dim, default):
    """Full-dim block for small dims (always legal), default tile otherwise."""
    return dim if dim <= default else default


def _pad_to(x, multiple, axis):
    size = x.shape[axis]
    pad = (-size) % multiple
    if pad == 0:
        return x
    widths = [(0, 0)] * x.ndim
    widths[axis] = (0, pad)
    return jnp.pad(x, widths)


def _vmem_limit(buffer_bytes):
    """Scoped-VMEM cap derived from the tile footprint (+ headroom).

    Kept <= 40 MiB so it is safe on v7x (64 MiB physical VMEM per TC) as
    well as v5e/v6e (128 MiB)."""
    return int(min(max(2 * buffer_bytes + (8 << 20), 24 << 20), 40 << 20))


# ---------------------------------------------------------------------------
# Kernel 1: generic tiled matmul (qkv_proj and o_proj), bf16 MXU, f32 acc
# ---------------------------------------------------------------------------
def matmul_kernel(x_ref, w_ref, o_ref, acc_ref):
    @pl.when(pl.program_id(2) == 0)
    def _():
        acc_ref[...] = jnp.zeros_like(acc_ref)

    acc_ref[...] += jnp.dot(x_ref[...], w_ref[...],
                            preferred_element_type=jnp.float32)

    @pl.when(pl.program_id(2) == pl.num_programs(2) - 1)
    def _():
        o_ref[...] = acc_ref[...].astype(o_ref.dtype)


def matmul(x, w, *, out_dtype=jnp.bfloat16, tm=512, tn=512, tk=512):
    """x: (M, K); w: (K, N) (pre-transposed vs torch Linear, stored bf16)."""
    M, K = x.shape
    K2, N = w.shape
    assert K == K2
    tm = _pick_tile(M, tm)
    tn = _pick_tile(N, tn)
    tk = _pick_tile(K, tk)

    # astype/pad are no-ops when x/w are already bf16 and tile-aligned.
    xb = _pad_to(_pad_to(x.astype(jnp.bfloat16), tm, 0), tk, 1)
    wb = _pad_to(_pad_to(w.astype(jnp.bfloat16), tk, 0), tn, 1)
    Mp, Kp = xb.shape
    Np = wb.shape[1]

    out_bytes = jnp.dtype(out_dtype).itemsize
    buf = 2 * (tm * tk * 2 + tk * tn * 2 + tm * tn * out_bytes) + tm * tn * 4

    out = pl.pallas_call(
        matmul_kernel,
        out_shape=jax.ShapeDtypeStruct((Mp, Np), out_dtype),
        grid_spec=pltpu.PrefetchScalarGridSpec(
            num_scalar_prefetch=0,
            grid=(Mp // tm, Np // tn, Kp // tk),
            in_specs=[
                pl.BlockSpec((tm, tk), lambda i, j, k: (i, k)),
                pl.BlockSpec((tk, tn), lambda i, j, k: (k, j)),
            ],
            out_specs=pl.BlockSpec((tm, tn), lambda i, j, k: (i, j)),
            scratch_shapes=[pltpu.VMEM((tm, tn), jnp.float32)],
        ),
        compiler_params=pltpu.CompilerParams(
            dimension_semantics=("parallel", "parallel", "arbitrary"),
            vmem_limit_bytes=_vmem_limit(buf)),
    )(xb, wb)
    return out[:M, :N]


# ---------------------------------------------------------------------------
# RoPE table (plain JAX, tiny) + rotate-half helper used inside the kernel
# ---------------------------------------------------------------------------
def rope_cos_sin(positions, head_dim, base):
    """positions: (B, S) int -> cos, sin of shape (B, S, head_dim), f32."""
    half = head_dim // 2
    inv_freq = 1.0 / (base ** (
        jnp.arange(0, half, dtype=jnp.float32) * 2.0 / head_dim))
    freqs = positions.astype(jnp.float32)[..., None] * inv_freq   # (B, S, half)
    cos = jnp.cos(freqs)
    sin = jnp.sin(freqs)
    return (jnp.concatenate([cos, cos], axis=-1),
            jnp.concatenate([sin, sin], axis=-1))


def _rotate_half(x):
    """GPT-NeoX rotate-half: [x1, x2] -> [-x2, x1] (last dim)."""
    d = x.shape[-1]
    half = d // 2
    if d % 128 == 0:
        # lane rotation on the XLU slot + sign flip on the first half
        rolled = pltpu.roll(x, shift=half, axis=-1)
        lane = jax.lax.broadcasted_iota(jnp.int32, x.shape, x.ndim - 1)
        return jnp.where(lane < half, -rolled, rolled)
    x1 = x[..., :half]
    x2 = x[..., half:]
    return jnp.concatenate([-x2, x1], axis=-1)


# ---------------------------------------------------------------------------
# Kernel 2: causal GQA flash attention with fused RoPE (online softmax)
# ---------------------------------------------------------------------------
def flash_rope_kernel(q_ref, k_ref, v_ref, cq_ref, sq_ref, ck_ref, sk_ref,
                      o_ref, qr_sc, m_sc, l_sc, acc_sc, *, scale, tq, tk):
    qi = pl.program_id(2)
    ki = pl.program_id(3)

    @pl.when(ki == 0)
    def _():
        m_sc[...] = jnp.full_like(m_sc, -1e30)
        l_sc[...] = jnp.zeros_like(l_sc)
        acc_sc[...] = jnp.zeros_like(acc_sc)
        # Rope Q once per q-tile into VMEM scratch (fused RoPE, no HBM pass).
        qf = q_ref[...].astype(jnp.float32)                       # (g, tq, D)
        cos = cq_ref[...]
        sin = sq_ref[...]
        qr_sc[...] = (qf * cos + _rotate_half(qf) * sin).astype(jnp.bfloat16)

    # Skip kv tiles that lie entirely above the causal diagonal (their K/V
    # DMAs are also elided because the index_map clamps the block index).
    @pl.when(ki * tk <= qi * tq + (tq - 1))
    def _():
        kf = k_ref[...].astype(jnp.float32)                       # (tk, D)
        k_bf = (kf * ck_ref[...] + _rotate_half(kf) * sk_ref[...]
                ).astype(jnp.bfloat16)
        v = v_ref[...].astype(jnp.bfloat16)                       # (tk, D)
        q = qr_sc[...]                                            # (g, tq, D)

        s = jax.lax.dot_general(q, k_bf, (((2,), (1,)), ((), ())),
                                preferred_element_type=jnp.float32) * scale
        q_pos = qi * tq + jax.lax.broadcasted_iota(jnp.int32, s.shape, 1)
        k_pos = ki * tk + jax.lax.broadcasted_iota(jnp.int32, s.shape, 2)
        s = jnp.where(q_pos >= k_pos, s, -1e30)

        m_prev = m_sc[...]                                        # (g, tq, 1)
        m_new = jnp.maximum(m_prev, jnp.max(s, axis=-1, keepdims=True))
        alpha = jnp.exp(m_prev - m_new)
        p = jnp.exp(s - m_new)                                    # f32
        l_sc[...] = alpha * l_sc[...] + jnp.sum(p, axis=-1, keepdims=True)
        acc_sc[...] = alpha * acc_sc[...] + jax.lax.dot_general(
            p.astype(jnp.bfloat16), v, (((2,), (0,)), ((), ())),
            preferred_element_type=jnp.float32)
        m_sc[...] = m_new

    @pl.when(ki == pl.num_programs(3) - 1)
    def _():
        # exact divide in the finalize (bit-accuracy of the normalization)
        o_ref[...] = (acc_sc[...] / l_sc[...]).astype(o_ref.dtype)


def flash_attention_rope(q, k, v, cos, sin, *, scale, tq=128, tk=256):
    """q: (B, Hq, S, D); k/v: (B, Hkv, S, D); cos/sin: (B, S, D).

    Causal GQA flash attention with RoPE applied to Q/K inside the kernel.
    Returns (B, Hq, S, D) bf16."""
    B, Hq, S, D = q.shape
    Hkv = k.shape[1]
    assert Hq % Hkv == 0
    group = Hq // Hkv

    tq = _pick_tile(S, tq)
    tk = _pick_tile(S, tk)
    mult = tq * tk // math.gcd(tq, tk)

    qp = _pad_to(q, mult, 2)
    kp = _pad_to(k, mult, 2)
    vp = _pad_to(v, mult, 2)
    cosp = _pad_to(cos, mult, 1)
    sinp = _pad_to(sin, mult, 1)
    Sp = qp.shape[2]

    def _kv_block(qi, ki):
        # clamp above-diagonal steps to the last needed block -> DMA elided
        return jnp.minimum(ki, (qi * tq + tq - 1) // tk)

    q_map = lambda b, hk, qi, ki: (b, hk, qi, 0)
    kv_map = lambda b, hk, qi, ki: (b, hk, _kv_block(qi, ki), 0)
    cq_map = lambda b, hk, qi, ki: (b, qi, 0)
    ck_map = lambda b, hk, qi, ki: (b, _kv_block(qi, ki), 0)

    buf = (2 * (group * tq * D * 2       # q (bf16)
                + 2 * tk * D * 2         # k, v (bf16)
                + 2 * tq * D * 4         # cos_q, sin_q (f32)
                + 2 * tk * D * 4         # cos_k, sin_k (f32)
                + group * tq * D * 2)    # out (bf16)
           + group * tq * (D * 2 + 8 + D * 4))   # scratch

    kern = functools.partial(flash_rope_kernel, scale=scale, tq=tq, tk=tk)
    out = pl.pallas_call(
        kern,
        out_shape=jax.ShapeDtypeStruct((B, Hq, Sp, D), jnp.bfloat16),
        grid_spec=pltpu.PrefetchScalarGridSpec(
            num_scalar_prefetch=0,
            grid=(B, Hkv, Sp // tq, Sp // tk),
            in_specs=[
                pl.BlockSpec((None, group, tq, D), q_map),
                pl.BlockSpec((None, None, tk, D), kv_map),
                pl.BlockSpec((None, None, tk, D), kv_map),
                pl.BlockSpec((None, tq, D), cq_map),
                pl.BlockSpec((None, tq, D), cq_map),
                pl.BlockSpec((None, tk, D), ck_map),
                pl.BlockSpec((None, tk, D), ck_map),
            ],
            out_specs=pl.BlockSpec((None, group, tq, D), q_map),
            scratch_shapes=[
                pltpu.VMEM((group, tq, D), jnp.bfloat16),   # roped Q
                pltpu.VMEM((group, tq, 1), jnp.float32),    # running max
                pltpu.VMEM((group, tq, 1), jnp.float32),    # running denom
                pltpu.VMEM((group, tq, D), jnp.float32),    # running out acc
            ],
        ),
        compiler_params=pltpu.CompilerParams(
            dimension_semantics=("parallel", "parallel", "parallel",
                                 "arbitrary"),
            vmem_limit_bytes=_vmem_limit(buf)),
    )(qp, kp, vp, cosp, sinp, cosp, sinp)
    return out[:, :, :S, :]


# ---------------------------------------------------------------------------
# Full SparsetralAttention forward (prefill, dense causal attention)
# ---------------------------------------------------------------------------
def sparsetral_attention_forward(positions, hidden_states, params, *,
                                 num_heads, num_kv_heads, head_dim,
                                 rope_theta):
    B, S, H = hidden_states.shape
    T = B * S
    q_size = num_heads * head_dim
    kv_size = num_kv_heads * head_dim
    x = hidden_states.reshape(T, H)

    # --- qkv_proj (Pallas tiled matmul, bf16 out) ---
    qkv = matmul(x, params["w_qkv"], out_dtype=jnp.bfloat16)      # (T, q+2kv)
    q = qkv[:, :q_size].reshape(B, S, num_heads, head_dim)
    k = qkv[:, q_size:q_size + kv_size].reshape(B, S, num_kv_heads, head_dim)
    v = qkv[:, q_size + kv_size:].reshape(B, S, num_kv_heads, head_dim)
    q = jnp.transpose(q, (0, 2, 1, 3))                            # (B, Hq, S, D)
    k = jnp.transpose(k, (0, 2, 1, 3))                            # (B, Hkv, S, D)
    v = jnp.transpose(v, (0, 2, 1, 3))

    # --- rotary tables (JAX) + fused RoPE/flash attention (Pallas) ---
    cos, sin = rope_cos_sin(positions, head_dim, rope_theta)
    attn = flash_attention_rope(q, k, v, cos, sin,
                                scale=head_dim ** -0.5)           # (B, Hq, S, D)
    attn = jnp.transpose(attn, (0, 2, 1, 3)).reshape(T, q_size)

    # --- o_proj (Pallas tiled matmul) ---
    out = matmul(attn, params["w_o"], out_dtype=hidden_states.dtype)
    return out.reshape(B, S, H)


def make_params(key, hidden_size, num_heads, num_kv_heads, head_dim):
    kq, ko = jax.random.split(key)
    q_size = num_heads * head_dim
    kv_size = num_kv_heads * head_dim
    scale = 0.05
    # stored [in, out] (pre-transposed vs torch's [out, in]); pre-cast to bf16
    # once at init so the matmul wrapper's astype/pad is a no-op per call.
    w_qkv = scale * jax.random.normal(
        kq, (hidden_size, q_size + 2 * kv_size), jnp.float32)
    w_o = scale * jax.random.normal(ko, (q_size, hidden_size), jnp.float32)
    return {
        "w_qkv": w_qkv.astype(jnp.bfloat16),
        "w_o": w_o.astype(jnp.bfloat16),
    }


if __name__ == "__main__":
    # small config consistent with the module
    batch, seq = 2, 8
    hidden_size = 64
    num_heads = 4
    num_kv_heads = 2
    head_dim = hidden_size // num_heads     # 16
    rope_theta = 10000.0

    key = jax.random.PRNGKey(0)
    kx, kp = jax.random.split(key)
    x = jax.random.normal(kx, (batch, seq, hidden_size), jnp.float32)
    positions = jnp.broadcast_to(jnp.arange(seq, dtype=jnp.int32),
                                 (batch, seq))
    params = make_params(kp, hidden_size, num_heads, num_kv_heads, head_dim)

    out = sparsetral_attention_forward(
        positions, x, params,
        num_heads=num_heads, num_kv_heads=num_kv_heads,
        head_dim=head_dim, rope_theta=rope_theta)
    out = jax.block_until_ready(out)
    assert out.shape == (batch, seq, hidden_size)
    assert bool(jnp.all(jnp.isfinite(out)))
    print("KERNEL_OK")
</pallas_src>

<mosaic_0001>
module attributes {stable_mosaic.version = 11 : i64} {
  func.func @matmul_kernel(%arg0: i32, %arg1: i32, %arg2: i32, %arg3: memref<16x64xbf16, #tpu.memory_space<vmem>>, %arg4: memref<64x128xbf16, #tpu.memory_space<vmem>>, %arg5: memref<16x128xbf16, #tpu.memory_space<vmem>>, %arg6: memref<16x128xf32, #tpu.memory_space<vmem>>) attributes {dimension_semantics = [#tpu.dimension_semantics<parallel>, #tpu.dimension_semantics<parallel>, #tpu.dimension_semantics<arbitrary>], iteration_bounds = array<i64: 1, 1, 1>, scalar_prefetch = 0 : i64, scratch_operands = 1 : i64, tpu.core_type = #tpu.core_type<tc>, window_params = [{transform_indices = @transform_0, window_bounds = array<i64: 16, 64>}, {transform_indices = @transform_1, window_bounds = array<i64: 64, 128>}, {transform_indices = @transform_2, window_bounds = array<i64: 16, 128>}]} {
    %c0_i32 = arith.constant 0 : i32
    %0 = arith.cmpi eq, %arg2, %c0_i32 : i32
    %1 = arith.extui %0 : i1 to i32
    %c0_i32_0 = arith.constant 0 : i32
    %2 = arith.cmpi ne, %1, %c0_i32_0 : i32
    scf.if %2 {
      %cst_10 = arith.constant 0.000000e+00 : f32
      %12 = vector.broadcast %cst_10 : f32 to vector<16x128xf32>
      %c0_11 = arith.constant 0 : index
      %c0_12 = arith.constant 0 : index
      %13 = vector.load %arg6[%c0_11, %c0_12] : memref<16x128xf32, #tpu.memory_space<vmem>>, vector<16x128xf32>
      tpu.vector_store %arg6[%c0_11, %c0_12], %12 {strides = array<i32>} : memref<16x128xf32, #tpu.memory_space<vmem>>, vector<16x128xf32>,
    } else {
    }
    %c0 = arith.constant 0 : index
    %c0_1 = arith.constant 0 : index
    %3 = vector.load %arg6[%c0, %c0_1] : memref<16x128xf32, #tpu.memory_space<vmem>>, vector<16x128xf32>
    %c0_2 = arith.constant 0 : index
    %c0_3 = arith.constant 0 : index
    %4 = vector.load %arg3[%c0_2, %c0_3] : memref<16x64xbf16, #tpu.memory_space<vmem>>, vector<16x64xbf16>
    %c0_4 = arith.constant 0 : index
    %c0_5 = arith.constant 0 : index
    %5 = vector.load %arg4[%c0_4, %c0_5] : memref<64x128xbf16, #tpu.memory_space<vmem>>, vector<64x128xbf16>
    %cst = arith.constant dense<0.000000e+00> : vector<16x128xf32>
    %6 = tpu.matmul %4, %5, %cst {dimension_numbers = #tpu.dot_dimension_numbers<[1], [0], [0], [1], [0, 0, 1, 1], [], []>} : vector<16x64xbf16>, vector<64x128xbf16>, vector<16x128xf32> -> vector<16x128xf32>
    %7 = arith.addf %3, %6 : vector<16x128xf32>
    %c0_6 = arith.constant 0 : index
    %c0_7 = arith.constant 0 : index
    %8 = vector.load %arg6[%c0_6, %c0_7] : memref<16x128xf32, #tpu.memory_space<vmem>>, vector<16x128xf32>
    tpu.vector_store %arg6[%c0_6, %c0_7], %7 {strides = array<i32>} : memref<16x128xf32, #tpu.memory_space<vmem>>, vector<16x128xf32>,
    %c0_i32_8 = arith.constant 0 : i32
    %9 = arith.cmpi eq, %arg2, %c0_i32_8 : i32
    %10 = arith.extui %9 : i1 to i32
    %c0_i32_9 = arith.constant 0 : i32
    %11 = arith.cmpi ne, %10, %c0_i32_9 : i32
    scf.if %11 {
      %c0_10 = arith.constant 0 : index
      %c0_11 = arith.constant 0 : index
      %12 = vector.load %arg6[%c0_10, %c0_11] : memref<16x128xf32, #tpu.memory_space<vmem>>, vector<16x128xf32>
      %13 = arith.truncf %12 : vector<16x128xf32> to vector<16x128xbf16>
      %c0_12 = arith.constant 0 : index
      %c0_13 = arith.constant 0 : index
      %14 = vector.load %arg5[%c0_12, %c0_13] : memref<16x128xbf16, #tpu.memory_space<vmem>>, vector<16x128xbf16>
      tpu.vector_store %arg5[%c0_12, %c0_13], %13 {strides = array<i32>} : memref<16x128xbf16, #tpu.memory_space<vmem>>, vector<16x128xbf16>,
    } else {
    }
    return
  }
  func.func @transform_0(%arg0: i32, %arg1: i32, %arg2: i32) -> (i32, i32) {
    %c0_i32 = arith.constant 0 : i32
    return %arg0, %arg2 : i32, i32
  }
  func.func @transform_1(%arg0: i32, %arg1: i32, %arg2: i32) -> (i32, i32) {
    %c0_i32 = arith.constant 0 : i32
    return %arg2, %arg1 : i32, i32
  }
  func.func @transform_2(%arg0: i32, %arg1: i32, %arg2: i32) -> (i32, i32) {
    %c0_i32 = arith.constant 0 : i32
    return %arg0, %arg1 : i32, i32
  }
}

</mosaic_0001>

<llo_original>
// kernel: tpu_custom_call.1
$region0: #{tpu_custom_call.1}
  #allocation0 [shape = 'u32[]', space=smem, size = 0x4, offset = 0x4, fixed_abs, tag = 'smem constant byte address 0x4 - core index']
  #allocation1 [shape = 'u32[72,128]{1,0:T(1,128)}', space=vmem, size = 0x9000, scoped, tag = 'internal scratch']
  #allocation2 [shape = 'f32[16,128]{1,0:T(8,128)}', space=vmem, size = 0x2000, scoped, tag = 'scratch operand']
  %s0 = inlined_call_operand.hbm [shape: bf16[16,64], index: 0, kind: input, shape index: {}]
  %s1 = inlined_call_operand.hbm [shape: bf16[64,128], index: 1, kind: input, shape index: {}]
  %s2 = inlined_call_operand.hbm [shape: bf16[16,128], index: 2, kind: output, shape index: {}]
  %s3 = sld [smem:[#allocation0]]
  $region34: #{tpu_custom_call.1} parent=0
    _
  %s5 = ssub.s32 1, %s3
  %s6 = scalar_select 0, %s5, %s3
  $region1: #{tpu_custom_call.1} parent=0
    #allocation3 [shape = 'u8[4096]{0}', space=vmem, size = 0x1000, scoped, tag = 'input window, operand 0, single buffered']
    #allocation4 [shape = 's32[1]{0}', space=sflag, size = 0x4, scoped, tag = 'scoped memory for tpu_custom_call.1']
    #allocation5 [shape = 's32[1]{0}', space=sflag, size = 0x4, scoped, tag = 'scoped memory for tpu_custom_call.1']
    #allocation6 [shape = 'u8[16384]{0}', space=vmem, size = 0x4000, scoped, tag = 'input window, operand 1, single buffered']
    #allocation7 [shape = 's32[1]{0}', space=sflag, size = 0x4, scoped, tag = 'scoped memory for tpu_custom_call.1']
    #allocation8 [shape = 'u8[4096]{0}', space=vmem, size = 0x1000, scoped, tag = 'output window, operand 0, single buffered']
    %7 = vsyncpa [#allocation4], 0
    %8 = vsyncpa [#allocation7], 0
    %9 = vsyncpa [#allocation5], 0
    // Predicated region
    $region2: #{tpu_custom_call.1} parent=1 // pred_check
      _
    $region3: #{tpu_custom_call.1} parent=1 // pred_check_branch
      %11 = sbr.rel (0) target = $region5
    $region4: #{tpu_custom_call.1} parent=1 // pred_region
      %13 = vsyncadd [#allocation4], 0
      %s14 = sshll.u32 %s0, 4
      %s15 = int_to_ptr.hbm [resolvable:$true] %s14
      %s16 = sshll.u32 [#allocation3], 4
      %s17 = int_to_ptr.vmem [resolvable:$true] %s16
      %22 = dma.hbm_to_vmem [thread:$0]  %s15, 128, %s17, [#allocation4], 64, 64, 4
    $region5: #{tpu_custom_call.1} parent=1 // pred_fallthru
      _
    // Predicated region
    $region6: #{tpu_custom_call.1} parent=1 // pred_check
      _
    $region7: #{tpu_custom_call.1} parent=1 // pred_check_branch
      %24 = sbr.rel (0) target = $region9
    $region8: #{tpu_custom_call.1} parent=1 // pred_region
      %26 = vsyncadd [#allocation7], 0
      %s27 = sshll.u32 %s1, 4
      %s28 = int_to_ptr.hbm [resolvable:$true] %s27
      %s29 = sshll.u32 [#allocation6], 4
      %s30 = int_to_ptr.vmem [resolvable:$true] %s29
      %35 = dma.hbm_to_vmem [thread:$0]  %s28, 512, %s30, [#allocation7], 64, 64, 4
    $region9: #{tpu_custom_call.1} parent=1 // pred_fallthru
      _
    // Predicated region
    $region10: #{tpu_custom_call.1} parent=1 // pred_check
      _
    $region11: #{tpu_custom_call.1} parent=1 // pred_check_branch
      %37 = sbr.rel (0) target = $region13
    $region12: #{tpu_custom_call.1} parent=1 // pred_region
      %39 = dma.done [#allocation4], 128
    $region13: #{tpu_custom_call.1} parent=1 // pred_fallthru
      _
    // Predicated region
    $region14: #{tpu_custom_call.1} parent=1 // pred_check
      _
    $region15: #{tpu_custom_call.1} parent=1 // pred_check_branch
      %41 = sbr.rel (0) target = $region17
    $region16: #{tpu_custom_call.1} parent=1 // pred_region
      %43 = dma.done [#allocation7], 512
    $region17: #{tpu_custom_call.1} parent=1 // pred_fallthru
      _
    %p45 = scmp.eq.s32.totalorder 0, 0
    // Predicated region
    $region18: #{tpu_custom_call.1} parent=1 // pred_check
      %p46 = pneg %p45
    $region19: #{tpu_custom_call.1} parent=1 // pred_check_branch
      %48 = sbr.rel (%p46) target = $region21
    $region20: #{tpu_custom_call.1} parent=1 // pred_region
      %49 = vst [vmem:[#allocation2] sm:$0xff] 0.0
      %50 = vst [vmem:[#allocation2 + $0x8] sm:$0xff] 0.0
    $region21: #{tpu_custom_call.1} parent=1 // pred_fallthru
      _
    %v51 = vld [vmem:[#allocation2] sm:$0xff]
    %v52 = vld [vmem:[#allocation2 + $0x8] sm:$0xff]
    %v53 = vld [vmem:[#allocation3] sm:$0xf]
    %v54 = vld [vmem:[#allocation3 + $0x4] sm:$0xf]
    %v55 = vld [vmem:[#allocation6] sm:$0xf]
    %v56 = vld [vmem:[#allocation6 + $0x4] sm:$0xf]
    %v57 = vld [vmem:[#allocation6 + $0x8] sm:$0xf]
    %v58 = vld [vmem:[#allocation6 + $0xc] sm:$0xf]
    %v59 = vld [vmem:[#allocation6 + $0x10] sm:$0xf]
    %v60 = vld [vmem:[#allocation6 + $0x14] sm:$0xf]
    %v61 = vld [vmem:[#allocation6 + $0x18] sm:$0xf]
    %v62 = vld [vmem:[#allocation6 + $0x1c] sm:$0xf]
    %v65 = vunpack.c.l.b16 %v53
    %v66 = vunpack.c.l.b16 %v54
    %v67 = vpack.c.b16 %v66, %v65
    %v76 = vunpack.c.l.b16 %v55
    %v77 = vunpack.c.l.b16 %v56
    %v78 = vunpack.c.l.b16 %v57
    %v79 = vunpack.c.l.b16 %v58
    %v80 = vunpack.c.l.b16 %v59
    %v81 = vunpack.c.l.b16 %v60
    %v82 = vunpack.c.l.b16 %v61
    %v83 = vunpack.c.l.b16 %v62
    %v84 = vpack.c.b16 %v77, %v76
    %v85 = vpack.c.b16 %v79, %v78
    %v86 = vpack.c.b16 %v81, %v80
    %v87 = vpack.c.b16 %v83, %v82
    %vm92 = vcmask 523264
    %v94 = vsel %vm92, %v67, 0
    %96 = vmatpush.bf16.msra.mxu0 0
    %97 = vmatpush.bf16.msra.mxu0 0
    %98 = vmatpush.bf16.msra.mxu0 0
    %99 = vmatpush.bf16.msra.mxu0 0
    %100 = vmatpush.bf16.msra.mxu0 %v87
    %101 = vmatpush.bf16.msra.mxu0 %v86
    %102 = vmatpush.bf16.msra.mxu0 %v85
    %103 = vmatpush.bf16.msra.mxu0 %v84
    %104 = vmatmul.bf16.gmra.mxu0 %v94
    %v105 = vpop.f32.mrf.mxu0
    %v106 = vadd.f32 0.0, %v105
    %v107 = vpop.f32.mrf.mxu0
    %v108 = vadd.f32 0.0, %v107
    %109 = vdwg.mxu0
    %v110 = vadd.f32 %v51, %v106
    %v111 = vadd.f32 %v52, %v108
    %112 = vst [vmem:[#allocation2] sm:$0xff] %v110
    %113 = vst [vmem:[#allocation2 + $0x8] sm:$0xff] %v111
    // Predicated region
    $region22: #{tpu_custom_call.1} parent=1 // pred_check
      %p114 = pneg %p45
    $region23: #{tpu_custom_call.1} parent=1 // pred_check_branch
      %116 = sbr.rel (%p114) target = $region25
    $region24: #{tpu_custom_call.1} parent=1 // pred_region
      %v117 = vld [vmem:[#allocation2] sm:$0xff]
      %v118 = vld [vmem:[#allocation2 + $0x8] sm:$0xff]
      %v119 = vpack.c.bf16 %v117, %v117
      %v120 = vpack.c.bf16 %v118, %v118
      %121 = vst [vmem:[#allocation8] sm:$0xf] %v119
      %122 = vst [vmem:[#allocation8 + $0x4] sm:$0xf] %v120
    $region25: #{tpu_custom_call.1} parent=1 // pred_fallthru
      _
    // Predicated region
    $region26: #{tpu_custom_call.1} parent=1 // pred_check
      _
    $region27: #{tpu_custom_call.1} parent=1 // pred_check_branch
      %124 = sbr.rel (0) target = $region29
    $region28: #{tpu_custom_call.1} parent=1 // pred_region
      %126 = vsyncadd [#allocation5], 0
      %s127 = sshll.u32 [#allocation8], 4
      %s128 = int_to_ptr.vmem [resolvable:$true] %s127
      %s129 = sshll.u32 %s2, 4
      %s130 = int_to_ptr.hbm [resolvable:$true] %s129
      %135 = dma.vmem_to_hbm [thread:$0]  %s128, 128, %s130, [#allocation5], 64, 64, 4
    $region29: #{tpu_custom_call.1} parent=1 // pred_fallthru
      _
    // Predicated region
    $region30: #{tpu_custom_call.1} parent=1 // pred_check
      _
    $region31: #{tpu_custom_call.1} parent=1 // pred_check_branch
      %137 = sbr.rel (0) target = $region33
    $region32: #{tpu_custom_call.1} parent=1 // pred_region
      %139 = dma.done [#allocation5], 128
    $region33: #{tpu_custom_call.1} parent=1 // pred_fallthru
      _
    %140 = vsyncpa [#allocation4], 1
    %141 = vsyncpa [#allocation7], 1
    %142 = vsyncpa [#allocation5], 1

</llo_original>
